<compile_context>
chip_gen: v5e
topology: v5e:2x2
jax: 0.10.0
libtpu: 0.0.40
codegen_flags: <defaults>
</compile_context>

<pallas_src>
import jax
import jax.numpy as jnp
from jax import lax
from jax.experimental import pallas as pl
from jax.experimental.pallas import tpu as pltpu

# ---- model hyper-parameters (match the original script) ----
n_class = 26          # alphabet size (one-hot input / output classes)
hidden_size = 128     # LSTM hidden size (lane aligned)
seq_len = 3           # n_step in the original script
batch = 10            # number of words per batch

LANE = 128
assert hidden_size % LANE == 0, "gate slices assume lane-aligned hidden_size"


def _round_up(n, m):
    return ((n + m - 1) // m) * m


def textlstm_kernel(ids_ref, xtab_ref, outb_ref, whh_hbm, wout_hbm,
                    out_ref, whh_buf, wout_buf, dma_sem):
    """Single-program kernel: whole LSTM recurrence + output projection.

    ids_ref  : [T*B, 1]       int32 VMEM  time-major letter ids (pad rows = 0)
    xtab_ref : [C_pad, 4H]    bf16  VMEM  W_ih^T + (b_ih + b_hh); pad rows zero
    outb_ref : [1, Cout_pad]  f32   VMEM  output bias b (pad cols zero)
    whh_hbm  : [H, 4H]        bf16  ANY   W_hh^T (manually DMA'd)
    wout_hbm : [H, Cout_pad]  bf16  ANY   W_out^T (manually DMA'd)
    out_ref  : [B, Cout_pad]  f32   VMEM
    whh_buf / wout_buf : VMEM scratch landing buffers for the manual DMAs
    dma_sem  : DMA semaphores, shape (2,)
    """
    B = out_ref.shape[0]
    TB = ids_ref.shape[0]
    T = TB // B
    H = whh_buf.shape[0]
    C_pad = xtab_ref.shape[0]

    # Kick off the recurrent / output weight DMAs immediately; they overlap
    # with the (MXU) input projection below.
    whh_cp = pltpu.make_async_copy(whh_hbm, whh_buf, dma_sem.at[0])
    whh_cp.start()
    wout_cp = pltpu.make_async_copy(wout_hbm, wout_buf, dma_sem.at[1])
    wout_cp.start()

    # In-kernel one-hot (replaces the wrapper's one_hot/transpose/pad/cast glue)
    # followed by ONE hoisted MXU pass over all T steps; the LSTM bias is
    # pre-folded into xtab, so no per-step broadcast add is needed.
    iota = lax.broadcasted_iota(jnp.int32, (TB, C_pad), 1)
    onehot = jnp.where(ids_ref[...] == iota, 1.0, 0.0).astype(jnp.bfloat16)
    xproj = jnp.dot(onehot, xtab_ref[...],
                    preferred_element_type=jnp.float32)          # [T*B, 4H] f32

    h = jnp.zeros((B, H), jnp.float32)
    c = jnp.zeros((B, H), jnp.float32)

    whh_cp.wait()                      # need W_hh only now
    whh = whh_buf[...]                 # bf16 [H, 4H]

    # T is tiny and static -> fully unrolled recurrence; every slice below is
    # static and (8,128)-tile aligned.  Only h @ W_hh remains per step.
    # NOTE: h is re-cast to bf16 each step; rounding accumulates with T, fine
    # for T=3 at the 5e-2 tolerance used below.
    for t in range(T):
        gates = xproj[t * B:(t + 1) * B, :] + jnp.dot(
            h.astype(jnp.bfloat16), whh, preferred_element_type=jnp.float32)
        i = jax.nn.sigmoid(gates[:, 0:H])        # PyTorch gate order: i, f, g, o
        f = jax.nn.sigmoid(gates[:, H:2 * H])
        g = jnp.tanh(gates[:, 2 * H:3 * H])
        o = jax.nn.sigmoid(gates[:, 3 * H:4 * H])
        c = f * c + i * g
        h = o * jnp.tanh(c)

    wout_cp.wait()                     # need W_out only now
    # Output projection; Cout_pad = 128 -> lane-dense unmasked stores.
    out_ref[...] = (
        jnp.dot(h.astype(jnp.bfloat16), wout_buf[...],
                preferred_element_type=jnp.float32)
        + outb_ref[...]
    )


def prepare_params(params):
    """One-time weight prep (hoisted out of the per-call path and cached)."""
    C_in_pad = _round_up(n_class, LANE)
    C_out_pad = _round_up(n_class, LANE)
    bias = (params["b_ih"] + params["b_hh"]).astype(jnp.float32)          # [4H]
    xtab = params["w_ih"].T.astype(jnp.float32) + bias[None, :]           # [26, 4H]
    xtab = jnp.pad(xtab, ((0, C_in_pad - n_class), (0, 0))).astype(jnp.bfloat16)
    whh_t = params["w_hh"].T.astype(jnp.bfloat16)                         # [H, 4H]
    wout_t = jnp.pad(params["w_out"].T,
                     ((0, 0), (0, C_out_pad - n_class))).astype(jnp.bfloat16)
    outb = jnp.pad(params["b"].reshape(1, -1),
                   ((0, 0), (0, C_out_pad - n_class))).astype(jnp.float32)
    return {"xtab": xtab, "whh_t": whh_t, "wout_t": wout_t, "outb": outb}


@jax.jit
def textlstm_forward(x_btc, prepped):
    """x_btc: [batch, seq_len, n_class] one-hot (PyTorch batch-first input)."""
    Bn, T, C = x_btc.shape
    B_pad = _round_up(Bn, 8)          # sublane-aligned batch (10 -> 16)
    C_out_pad = _round_up(C, LANE)

    # Only per-call glue: letter ids from the one-hot input (tiny int ops that
    # fuse into one kernel).  Pad ids are 0 -> select a valid table row; padded
    # batch rows evolve independently and are sliced off below.
    ids = jnp.argmax(x_btc, axis=-1).astype(jnp.int32)         # [B, T]
    ids = jnp.pad(ids.T, ((0, 0), (0, B_pad - Bn)))            # [T, B_pad] time-major
    ids = ids.reshape(T * B_pad, 1)

    out_pad = pl.pallas_call(
        textlstm_kernel,
        out_shape=jax.ShapeDtypeStruct((B_pad, C_out_pad), jnp.float32),
        in_specs=[
            pl.BlockSpec(memory_space=pltpu.MemorySpace.VMEM),  # ids
            pl.BlockSpec(memory_space=pltpu.MemorySpace.VMEM),  # xtab (W_ih^T + bias)
            pl.BlockSpec(memory_space=pltpu.MemorySpace.VMEM),  # output bias b
            pl.BlockSpec(memory_space=pl.ANY),                  # W_hh^T  (manual DMA)
            pl.BlockSpec(memory_space=pl.ANY),                  # W_out^T (manual DMA)
        ],
        out_specs=pl.BlockSpec(memory_space=pltpu.MemorySpace.VMEM),
        scratch_shapes=[
            pltpu.VMEM((hidden_size, 4 * hidden_size), jnp.bfloat16),  # whh_buf
            pltpu.VMEM((hidden_size, C_out_pad), jnp.bfloat16),        # wout_buf
            pltpu.SemaphoreType.DMA((2,)),
        ],
    )(ids, prepped["xtab"], prepped["outb"], prepped["whh_t"], prepped["wout_t"])

    # strip the lane/sublane padding
    return out_pad[:Bn, :C]


def reference_forward(x_btc, params):
    """Pure-JAX f32 reference (mirrors torch.nn.LSTM + Linear + b)."""
    x_tbc = jnp.transpose(x_btc, (1, 0, 2)).astype(jnp.float32)
    H = hidden_size
    wih_t = params["w_ih"].T
    whh_t = params["w_hh"].T
    bias = params["b_ih"] + params["b_hh"]

    def step(carry, x_t):
        h, c = carry
        gates = x_t @ wih_t + h @ whh_t + bias
        i = jax.nn.sigmoid(gates[:, 0:H])
        f = jax.nn.sigmoid(gates[:, H:2 * H])
        g = jnp.tanh(gates[:, 2 * H:3 * H])
        o = jax.nn.sigmoid(gates[:, 3 * H:4 * H])
        c_new = f * c + i * g
        h_new = o * jnp.tanh(c_new)
        return (h_new, c_new), None

    B = x_btc.shape[0]
    h0 = jnp.zeros((B, H), jnp.float32)
    c0 = jnp.zeros((B, H), jnp.float32)
    (h_last, _), _ = lax.scan(step, (h0, c0), x_tbc)
    return h_last @ params["w_out"].T + params["b"]


def init_params(key):
    """Deterministic synthetic params; shapes match nn.LSTM / nn.Linear."""
    k = 1.0 / jnp.sqrt(hidden_size)
    keys = jax.random.split(key, 5)
    return {
        "w_ih": jax.random.uniform(keys[0], (4 * hidden_size, n_class),
                                   jnp.float32, -k, k),
        "w_hh": jax.random.uniform(keys[1], (4 * hidden_size, hidden_size),
                                   jnp.float32, -k, k),
        "b_ih": jax.random.uniform(keys[2], (4 * hidden_size,),
                                   jnp.float32, -k, k),
        "b_hh": jax.random.uniform(keys[3], (4 * hidden_size,),
                                   jnp.float32, -k, k),
        "w_out": jax.random.uniform(keys[4], (n_class, hidden_size),
                                    jnp.float32, -k, k),
        "b": jnp.ones((n_class,), jnp.float32),  # nn.Parameter(torch.ones([n_class]))
    }


if __name__ == "__main__":
    key = jax.random.PRNGKey(0)
    pkey, xkey = jax.random.split(key)
    params = init_params(pkey)
    prepped = prepare_params(params)   # cached once, off the per-call hot path

    # One-hot input batch: [batch, seq_len, n_class]
    letters = jax.random.randint(xkey, (batch, seq_len), 0, n_class)
    x = jax.nn.one_hot(letters, n_class, dtype=jnp.float32)

    y = jax.block_until_ready(textlstm_forward(x, prepped))
    y_ref = jax.block_until_ready(reference_forward(x, params))

    assert y.shape == (batch, n_class)
    # bf16 MXU operands / bf16 bias fold (f32 accumulation) vs. pure-f32 reference.
    assert jnp.allclose(y, y_ref, atol=5e-2, rtol=5e-2)
    print("KERNEL_OK")
</pallas_src>

<mosaic_0001>
module attributes {stable_mosaic.version = 11 : i64} {
  func.func @textlstm_kernel(%arg0: memref<48x1xi32, #tpu.memory_space<vmem>>, %arg1: memref<128x512xbf16, #tpu.memory_space<vmem>>, %arg2: memref<1x128xf32, #tpu.memory_space<vmem>>, %arg3: memref<128x512xbf16, #tpu.memory_space<any>>, %arg4: memref<128x128xbf16, #tpu.memory_space<any>>, %arg5: memref<16x128xf32, #tpu.memory_space<vmem>>, %arg6: memref<128x512xbf16, #tpu.memory_space<vmem>>, %arg7: memref<128x128xbf16, #tpu.memory_space<vmem>>, %arg8: memref<2x!tpu.dma_semaphore, #tpu.memory_space<semaphore_mem>>) attributes {dimension_semantics = [], scalar_prefetch = 0 : i64, scratch_operands = 3 : i64, tpu.core_type = #tpu.core_type<tc>} {
    %c0_i32 = arith.constant 0 : i32
    %0 = tpu.memref_slice %arg8[%c0_i32] : memref<2x!tpu.dma_semaphore, #tpu.memory_space<semaphore_mem>> -> memref<1x!tpu.dma_semaphore, #tpu.memory_space<semaphore_mem>>
    %1 = tpu.memref_squeeze %0 : memref<1x!tpu.dma_semaphore, #tpu.memory_space<semaphore_mem>> -> memref<!tpu.dma_semaphore, #tpu.memory_space<semaphore_mem>>
    tpu.enqueue_dma source(%arg3 : memref<128x512xbf16, #tpu.memory_space<any>>) target(%arg6 : memref<128x512xbf16, #tpu.memory_space<vmem>>) target_semaphore(%1 : memref<!tpu.dma_semaphore, #tpu.memory_space<semaphore_mem>>)
    %c1_i32 = arith.constant 1 : i32
    %2 = tpu.memref_slice %arg8[%c1_i32] : memref<2x!tpu.dma_semaphore, #tpu.memory_space<semaphore_mem>> -> memref<1x!tpu.dma_semaphore, #tpu.memory_space<semaphore_mem>>
    %3 = tpu.memref_squeeze %2 : memref<1x!tpu.dma_semaphore, #tpu.memory_space<semaphore_mem>> -> memref<!tpu.dma_semaphore, #tpu.memory_space<semaphore_mem>>
    tpu.enqueue_dma source(%arg4 : memref<128x128xbf16, #tpu.memory_space<any>>) target(%arg7 : memref<128x128xbf16, #tpu.memory_space<vmem>>) target_semaphore(%3 : memref<!tpu.dma_semaphore, #tpu.memory_space<semaphore_mem>>)
    %4 = tpu.iota {dimensions = array<i32: 1>} : vector<48x128xi32>
    %c0 = arith.constant 0 : index
    %c0_0 = arith.constant 0 : index
    %5 = vector.load %arg0[%c0, %c0_0] : memref<48x1xi32, #tpu.memory_space<vmem>>, vector<48x1xi32>
    %6 = vector.broadcast %5 : vector<48x1xi32> to vector<48x128xi32>
    %7 = arith.cmpi eq, %6, %4 : vector<48x128xi32>
    %cst = arith.constant 1.000000e+00 : f32
    %cst_1 = arith.constant 0.000000e+00 : f32
    %8 = vector.broadcast %cst : f32 to vector<48x128xf32>
    %9 = vector.broadcast %cst_1 : f32 to vector<48x128xf32>
    %10 = arith.select %7, %8, %9 : vector<48x128xi1>, vector<48x128xf32>
    %11 = arith.truncf %10 : vector<48x128xf32> to vector<48x128xbf16>
    %c0_2 = arith.constant 0 : index
    %c0_3 = arith.constant 0 : index
    %12 = vector.load %arg1[%c0_2, %c0_3] : memref<128x512xbf16, #tpu.memory_space<vmem>>, vector<128x512xbf16>
    %cst_4 = arith.constant dense<0.000000e+00> : vector<48x512xf32>
    %13 = tpu.matmul %11, %12, %cst_4 {dimension_numbers = #tpu.dot_dimension_numbers<[1], [0], [0], [1], [0, 0, 1, 1], [], []>} : vector<48x128xbf16>, vector<128x512xbf16>, vector<48x512xf32> -> vector<48x512xf32>
    %cst_5 = arith.constant 0.000000e+00 : f32
    %14 = vector.broadcast %cst_5 : f32 to vector<16x128xf32>
    %cst_6 = arith.constant 0.000000e+00 : f32
    %15 = vector.broadcast %cst_6 : f32 to vector<16x128xf32>
    %c0_i32_7 = arith.constant 0 : i32
    %16 = tpu.memref_slice %arg8[%c0_i32_7] : memref<2x!tpu.dma_semaphore, #tpu.memory_space<semaphore_mem>> -> memref<1x!tpu.dma_semaphore, #tpu.memory_space<semaphore_mem>>
    %17 = tpu.memref_squeeze %16 : memref<1x!tpu.dma_semaphore, #tpu.memory_space<semaphore_mem>> -> memref<!tpu.dma_semaphore, #tpu.memory_space<semaphore_mem>>
    tpu.wait_dma2 semaphore(%17 : memref<!tpu.dma_semaphore, #tpu.memory_space<semaphore_mem>>) src(%arg3 : memref<128x512xbf16, #tpu.memory_space<any>>) dst(%arg6 : memref<128x512xbf16, #tpu.memory_space<vmem>>)
    %c0_8 = arith.constant 0 : index
    %c0_9 = arith.constant 0 : index
    %18 = vector.load %arg6[%c0_8, %c0_9] : memref<128x512xbf16, #tpu.memory_space<vmem>>, vector<128x512xbf16>
    %19 = vector.extract_strided_slice %13 {offsets = [0, 0], sizes = [16, 512], strides = [1, 1]} : vector<48x512xf32> to vector<16x512xf32>
    %20 = arith.truncf %14 : vector<16x128xf32> to vector<16x128xbf16>
    %cst_10 = arith.constant dense<0.000000e+00> : vector<16x512xf32>
    %21 = tpu.matmul %20, %18, %cst_10 {dimension_numbers = #tpu.dot_dimension_numbers<[1], [0], [0], [1], [0, 0, 1, 1], [], []>} : vector<16x128xbf16>, vector<128x512xbf16>, vector<16x512xf32> -> vector<16x512xf32>
    %22 = arith.addf %19, %21 : vector<16x512xf32>
    %23 = vector.extract_strided_slice %22 {offsets = [0, 0], sizes = [16, 128], strides = [1, 1]} : vector<16x512xf32> to vector<16x128xf32>
    %24 = arith.negf %23 : vector<16x128xf32>
    %25 = math.exp %24 : vector<16x128xf32>
    %cst_11 = arith.constant 1.000000e+00 : f32
    %26 = vector.broadcast %cst_11 : f32 to vector<16x128xf32>
    %27 = arith.addf %26, %25 : vector<16x128xf32>
    %28 = arith.divf %26, %27 : vector<16x128xf32>
    %29 = vector.extract_strided_slice %22 {offsets = [0, 128], sizes = [16, 128], strides = [1, 1]} : vector<16x512xf32> to vector<16x128xf32>
    %30 = arith.negf %29 : vector<16x128xf32>
    %31 = math.exp %30 : vector<16x128xf32>
    %cst_12 = arith.constant 1.000000e+00 : f32
    %32 = vector.broadcast %cst_12 : f32 to vector<16x128xf32>
    %33 = arith.addf %32, %31 : vector<16x128xf32>
    %34 = arith.divf %32, %33 : vector<16x128xf32>
    %35 = vector.extract_strided_slice %22 {offsets = [0, 256], sizes = [16, 128], strides = [1, 1]} : vector<16x512xf32> to vector<16x128xf32>
    %36 = math.tanh %35 : vector<16x128xf32>
    %37 = vector.extract_strided_slice %22 {offsets = [0, 384], sizes = [16, 128], strides = [1, 1]} : vector<16x512xf32> to vector<16x128xf32>
    %38 = arith.negf %37 : vector<16x128xf32>
    %39 = math.exp %38 : vector<16x128xf32>
    %cst_13 = arith.constant 1.000000e+00 : f32
    %40 = vector.broadcast %cst_13 : f32 to vector<16x128xf32>
    %41 = arith.addf %40, %39 : vector<16x128xf32>
    %42 = arith.divf %40, %41 : vector<16x128xf32>
    %43 = arith.mulf %34, %15 : vector<16x128xf32>
    %44 = arith.mulf %28, %36 : vector<16x128xf32>
    %45 = arith.addf %43, %44 : vector<16x128xf32>
    %46 = math.tanh %45 : vector<16x128xf32>
    %47 = arith.mulf %42, %46 : vector<16x128xf32>
    %48 = vector.extract_strided_slice %13 {offsets = [16, 0], sizes = [16, 512], strides = [1, 1]} : vector<48x512xf32> to vector<16x512xf32>
    %49 = arith.truncf %47 : vector<16x128xf32> to vector<16x128xbf16>
    %cst_14 = arith.constant dense<0.000000e+00> : vector<16x512xf32>
    %50 = tpu.matmul %49, %18, %cst_14 {dimension_numbers = #tpu.dot_dimension_numbers<[1], [0], [0], [1], [0, 0, 1, 1], [], []>} : vector<16x128xbf16>, vector<128x512xbf16>, vector<16x512xf32> -> vector<16x512xf32>
    %51 = arith.addf %48, %50 : vector<16x512xf32>
    %52 = vector.extract_strided_slice %51 {offsets = [0, 0], sizes = [16, 128], strides = [1, 1]} : vector<16x512xf32> to vector<16x128xf32>
    %53 = arith.negf %52 : vector<16x128xf32>
    %54 = math.exp %53 : vector<16x128xf32>
    %cst_15 = arith.constant 1.000000e+00 : f32
    %55 = vector.broadcast %cst_15 : f32 to vector<16x128xf32>
    %56 = arith.addf %55, %54 : vector<16x128xf32>
    %57 = arith.divf %55, %56 : vector<16x128xf32>
    %58 = vector.extract_strided_slice %51 {offsets = [0, 128], sizes = [16, 128], strides = [1, 1]} : vector<16x512xf32> to vector<16x128xf32>
    %59 = arith.negf %58 : vector<16x128xf32>
    %60 = math.exp %59 : vector<16x128xf32>
    %cst_16 = arith.constant 1.000000e+00 : f32
    %61 = vector.broadcast %cst_16 : f32 to vector<16x128xf32>
    %62 = arith.addf %61, %60 : vector<16x128xf32>
    %63 = arith.divf %61, %62 : vector<16x128xf32>
    %64 = vector.extract_strided_slice %51 {offsets = [0, 256], sizes = [16, 128], strides = [1, 1]} : vector<16x512xf32> to vector<16x128xf32>
    %65 = math.tanh %64 : vector<16x128xf32>
    %66 = vector.extract_strided_slice %51 {offsets = [0, 384], sizes = [16, 128], strides = [1, 1]} : vector<16x512xf32> to vector<16x128xf32>
    %67 = arith.negf %66 : vector<16x128xf32>
    %68 = math.exp %67 : vector<16x128xf32>
    %cst_17 = arith.constant 1.000000e+00 : f32
    %69 = vector.broadcast %cst_17 : f32 to vector<16x128xf32>
    %70 = arith.addf %69, %68 : vector<16x128xf32>
    %71 = arith.divf %69, %70 : vector<16x128xf32>
    %72 = arith.mulf %63, %45 : vector<16x128xf32>
    %73 = arith.mulf %57, %65 : vector<16x128xf32>
    %74 = arith.addf %72, %73 : vector<16x128xf32>
    %75 = math.tanh %74 : vector<16x128xf32>
    %76 = arith.mulf %71, %75 : vector<16x128xf32>
    %77 = vector.extract_strided_slice %13 {offsets = [32, 0], sizes = [16, 512], strides = [1, 1]} : vector<48x512xf32> to vector<16x512xf32>
    %78 = arith.truncf %76 : vector<16x128xf32> to vector<16x128xbf16>
    %cst_18 = arith.constant dense<0.000000e+00> : vector<16x512xf32>
    %79 = tpu.matmul %78, %18, %cst_18 {dimension_numbers = #tpu.dot_dimension_numbers<[1], [0], [0], [1], [0, 0, 1, 1], [], []>} : vector<16x128xbf16>, vector<128x512xbf16>, vector<16x512xf32> -> vector<16x512xf32>
    %80 = arith.addf %77, %79 : vector<16x512xf32>
    %81 = vector.extract_strided_slice %80 {offsets = [0, 0], sizes = [16, 128], strides = [1, 1]} : vector<16x512xf32> to vector<16x128xf32>
    %82 = arith.negf %81 : vector<16x128xf32>
    %83 = math.exp %82 : vector<16x128xf32>
    %cst_19 = arith.constant 1.000000e+00 : f32
    %84 = vector.broadcast %cst_19 : f32 to vector<16x128xf32>
    %85 = arith.addf %84, %83 : vector<16x128xf32>
    %86 = arith.divf %84, %85 : vector<16x128xf32>
    %87 = vector.extract_strided_slice %80 {offsets = [0, 128], sizes = [16, 128], strides = [1, 1]} : vector<16x512xf32> to vector<16x128xf32>
    %88 = arith.negf %87 : vector<16x128xf32>
    %89 = math.exp %88 : vector<16x128xf32>
    %cst_20 = arith.constant 1.000000e+00 : f32
    %90 = vector.broadcast %cst_20 : f32 to vector<16x128xf32>
    %91 = arith.addf %90, %89 : vector<16x128xf32>
    %92 = arith.divf %90, %91 : vector<16x128xf32>
    %93 = vector.extract_strided_slice %80 {offsets = [0, 256], sizes = [16, 128], strides = [1, 1]} : vector<16x512xf32> to vector<16x128xf32>
    %94 = math.tanh %93 : vector<16x128xf32>
    %95 = vector.extract_strided_slice %80 {offsets = [0, 384], sizes = [16, 128], strides = [1, 1]} : vector<16x512xf32> to vector<16x128xf32>
    %96 = arith.negf %95 : vector<16x128xf32>
    %97 = math.exp %96 : vector<16x128xf32>
    %cst_21 = arith.constant 1.000000e+00 : f32
    %98 = vector.broadcast %cst_21 : f32 to vector<16x128xf32>
    %99 = arith.addf %98, %97 : vector<16x128xf32>
    %100 = arith.divf %98, %99 : vector<16x128xf32>
    %101 = arith.mulf %92, %74 : vector<16x128xf32>
    %102 = arith.mulf %86, %94 : vector<16x128xf32>
    %103 = arith.addf %101, %102 : vector<16x128xf32>
    %104 = math.tanh %103 : vector<16x128xf32>
    %105 = arith.mulf %100, %104 : vector<16x128xf32>
    %c1_i32_22 = arith.constant 1 : i32
    %106 = tpu.memref_slice %arg8[%c1_i32_22] : memref<2x!tpu.dma_semaphore, #tpu.memory_space<semaphore_mem>> -> memref<1x!tpu.dma_semaphore, #tpu.memory_space<semaphore_mem>>
    %107 = tpu.memref_squeeze %106 : memref<1x!tpu.dma_semaphore, #tpu.memory_space<semaphore_mem>> -> memref<!tpu.dma_semaphore, #tpu.memory_space<semaphore_mem>>
    tpu.wait_dma2 semaphore(%107 : memref<!tpu.dma_semaphore, #tpu.memory_space<semaphore_mem>>) src(%arg4 : memref<128x128xbf16, #tpu.memory_space<any>>) dst(%arg7 : memref<128x128xbf16, #tpu.memory_space<vmem>>)
    %108 = arith.truncf %105 : vector<16x128xf32> to vector<16x128xbf16>
    %c0_23 = arith.constant 0 : index
    %c0_24 = arith.constant 0 : index
    %109 = vector.load %arg7[%c0_23, %c0_24] : memref<128x128xbf16, #tpu.memory_space<vmem>>, vector<128x128xbf16>
    %cst_25 = arith.constant dense<0.000000e+00> : vector<16x128xf32>
    %110 = tpu.matmul %108, %109, %cst_25 {dimension_numbers = #tpu.dot_dimension_numbers<[1], [0], [0], [1], [0, 0, 1, 1], [], []>} : vector<16x128xbf16>, vector<128x128xbf16>, vector<16x128xf32> -> vector<16x128xf32>
    %c0_26 = arith.constant 0 : index
    %c0_27 = arith.constant 0 : index
    %111 = vector.load %arg2[%c0_26, %c0_27] : memref<1x128xf32, #tpu.memory_space<vmem>>, vector<1x128xf32>
    %112 = vector.broadcast %111 : vector<1x128xf32> to vector<16x128xf32>
    %113 = arith.addf %110, %112 : vector<16x128xf32>
    %c0_28 = arith.constant 0 : index
    %c0_29 = arith.constant 0 : index
    %114 = vector.load %arg5[%c0_28, %c0_29] : memref<16x128xf32, #tpu.memory_space<vmem>>, vector<16x128xf32>
    tpu.vector_store %arg5[%c0_28, %c0_29], %113 {strides = array<i32>} : memref<16x128xf32, #tpu.memory_space<vmem>>, vector<16x128xf32>,
    return
  }
}

</mosaic_0001>

<llo_original>
// kernel: textlstm_forward.1
$region0: #{textlstm_forward.1}
  #allocation0 [shape = 'u32[]', space=smem, size = 0x4, offset = 0x4, fixed_abs, tag = 'smem constant byte address 0x4 - core index']
  #allocation1 [shape = 'u32[72,128]{1,0:T(1,128)}', space=vmem, size = 0x9000, scoped, tag = 'internal scratch']
  #allocation2 [shape = 'bf16[128,512]{1,0:T(8,128)(2,1)}', space=vmem, size = 0x20000, scoped, tag = 'scratch operand']
  #allocation3 [shape = 'bf16[128,128]{1,0:T(8,128)(2,1)}', space=vmem, size = 0x8000, scoped, tag = 'scratch operand']
  #allocation4 [shape = 's32[2]{0}', space=sflag, size = 0x8, scoped, tag = 'scratch operand']
  #allocation9 [shape = 's32[]', space=sflag, size = 0x4, offset = 0, fixed_abs, tag = 'sflag constant byte address 0x0 - dummy sync flag']
  #allocation10 [shape = 's32[]', space=sflag, size = 0x4, offset = 0, fixed_abs, tag = 'sflag constant byte address 0x0 - dummy sync flag']
  #allocation11 [shape = 'u32[]', space=smem, size = 0x4, offset = 0x44, fixed_abs, tag = 'smem constant byte address 0x44 - assertion arg 0']
  #allocation12 [shape = 'u32[]', space=smem, size = 0x4, offset = 0x48, fixed_abs, tag = 'smem constant byte address 0x48 - assertion arg 1']
  #allocation13 [shape = 's32[]', space=sflag, size = 0x4, offset = 0, fixed_abs, tag = 'sflag constant byte address 0x0 - dummy sync flag']
  %s0 = inlined_call_operand.vmem [shape: s32[48,1], index: 0, kind: input, shape index: {}]
  %s1 = inlined_call_operand.hbm [shape: bf16[128,512], index: 1, kind: input, shape index: {}]
  %s2 = inlined_call_operand.vmem [shape: f32[1,128], index: 2, kind: input, shape index: {}]
  %s3 = inlined_call_operand.hbm [shape: bf16[128,512], index: 3, kind: input, shape index: {}]
  %s4 = inlined_call_operand.vmem [shape: bf16[128,128], index: 4, kind: input, shape index: {}]
  %s5 = inlined_call_operand.hbm [shape: f32[16,128], index: 5, kind: output, shape index: {}]
  %s6 = sld [smem:[#allocation0]]
  $region49: #{textlstm_forward.1} parent=0
    _
  %s8 = ssub.s32 1, %s6
  %s9 = scalar_select 0, %s8, %s6
  $region1: #{textlstm_forward.1} parent=0
    #allocation5 [shape = 'u8[131072]{0}', space=vmem, size = 0x20000, scoped, tag = 'input window, operand 1, single buffered']
    #allocation6 [shape = 's32[1]{0}', space=sflag, size = 0x4, scoped, tag = 'scoped memory for textlstm_forward.1']
    #allocation7 [shape = 's32[1]{0}', space=sflag, size = 0x4, scoped, tag = 'scoped memory for textlstm_forward.1']
    #allocation8 [shape = 'u8[8192]{0}', space=vmem, size = 0x2000, scoped, tag = 'output window, operand 0, single buffered']
    %10 = vsyncpa [#allocation6], 0
    %11 = vsyncpa [#allocation7], 0
    // Predicated region
    $region2: #{textlstm_forward.1} parent=1 // pred_check
      _
    $region3: #{textlstm_forward.1} parent=1 // pred_check_branch
      %13 = sbr.rel (0) target = $region5
    $region4: #{textlstm_forward.1} parent=1 // pred_region
      _
    $region5: #{textlstm_forward.1} parent=1 // pred_fallthru
      _
    // Predicated region
    $region6: #{textlstm_forward.1} parent=1 // pred_check
      _
    $region7: #{textlstm_forward.1} parent=1 // pred_check_branch
      %15 = sbr.rel (0) target = $region9
    $region8: #{textlstm_forward.1} parent=1 // pred_region
      %17 = vsyncadd [#allocation6], 0
      %s18 = sshll.u32 %s1, 4
      %s19 = int_to_ptr.hbm [resolvable:$true] %s18
      %s20 = sshll.u32 [#allocation5], 4
      %s21 = int_to_ptr.vmem [resolvable:$true] %s20
      %26 = dma.hbm_to_vmem [thread:$0]  %s19, 4096, %s21, [#allocation6], 256, 256, 16
    $region9: #{textlstm_forward.1} parent=1 // pred_fallthru
      _
    // Predicated region
    $region10: #{textlstm_forward.1} parent=1 // pred_check
      _
    $region11: #{textlstm_forward.1} parent=1 // pred_check_branch
      %28 = sbr.rel (0) target = $region13
    $region12: #{textlstm_forward.1} parent=1 // pred_region
      _
    $region13: #{textlstm_forward.1} parent=1 // pred_fallthru
      _
    // Predicated region
    $region14: #{textlstm_forward.1} parent=1 // pred_check
      _
    $region15: #{textlstm_forward.1} parent=1 // pred_check_branch
      %30 = sbr.rel (0) target = $region17
    $region16: #{textlstm_forward.1} parent=1 // pred_region
      %32 = dma.done [#allocation6], 4096
    $region17: #{textlstm_forward.1} parent=1 // pred_fallthru
      _
    // Predicated region
    $region18: #{textlstm_forward.1} parent=1 // pred_check
      _
    $region19: #{textlstm_forward.1} parent=1 // pred_check_branch
      %35 = sbr.rel target = $region21
    $region20: #{textlstm_forward.1} parent=1 // pred_region
      %36 = sst [smem:[#allocation11]] [#allocation10]
      %37 = sst [smem:[#allocation12]] [#allocation9]
    $region21: #{textlstm_forward.1} parent=1 // pred_fallthru
      _
    %39 = shalt.err (0)
    %s41 = sshll.u32 %s3, 4
    %s42 = int_to_ptr.hbm [resolvable:$true] %s41
    %s43 = sshll.u32 [#allocation2], 4
    %s44 = int_to_ptr.vmem [resolvable:$true] %s43
    %46 = dma.hbm_to_vmem [thread:$0]  %s42, 4096, %s44, [#allocation4]
    %s47 = scalar_lea.sflag [#allocation4], 1
    // Predicated region
    $region22: #{textlstm_forward.1} parent=1 // pred_check
      _
    $region23: #{textlstm_forward.1} parent=1 // pred_check_branch
      %49 = sbr.rel (0) target = $region25
    $region24: #{textlstm_forward.1} parent=1 // pred_region
      loop: start=0, step=1, limit=1
      $region26: #{textlstm_forward.1} parent=24 // loop_pre_header
        _
      $region27: #{textlstm_forward.1} parent=24 // loop_header
        %s51 = sphi 0, %s55
        %p52 = scmp.ge.s32.totalorder %s51, 1
        %s56 = sphi %s4, %s4
        %s57 = sphi [#allocation3], [#allocation3]
      $region28: #{textlstm_forward.1} parent=24 // loop_header_branch
        %54 = sbr.rel (%p52) target = $region32
      $region29: #{textlstm_forward.1} parent=24 // loop_body
        %v58 = vld [vmem:[%s56] sm:$0xff]
        %59 = vst [vmem:[%s57] sm:$0xff] %v58
        %v60 = vld [vmem:[%s56 + $0x8] sm:$0xff]
        %61 = vst [vmem:[%s57 + $0x8] sm:$0xff] %v60
        %v62 = vld [vmem:[%s56 + $0x10] sm:$0xff]
        %63 = vst [vmem:[%s57 + $0x10] sm:$0xff] %v62
        %v64 = vld [vmem:[%s56 + $0x18] sm:$0xff]
        %65 = vst [vmem:[%s57 + $0x18] sm:$0xff] %v64
        %v66 = vld [vmem:[%s56 + $0x20] sm:$0xff]
        %67 = vst [vmem:[%s57 + $0x20] sm:$0xff] %v66
        %v68 = vld [vmem:[%s56 + $0x28] sm:$0xff]
        %69 = vst [vmem:[%s57 + $0x28] sm:$0xff] %v68
        %v70 = vld [vmem:[%s56 + $0x30] sm:$0xff]
        %71 = vst [vmem:[%s57 + $0x30] sm:$0xff] %v70
        %v72 = vld [vmem:[%s56 + $0x38] sm:$0xff]
        %73 = vst [vmem:[%s57 + $0x38] sm:$0xff] %v72
      $region30: #{textlstm_forward.1} parent=24 // loop_footer
        %s55 = sadd.s32 1, %s51
      $region31: #{textlstm_forward.1} parent=24 // loop_footer_branch
        %50 = sbr.rel target = $region27
      $region32: #{textlstm_forward.1} parent=24 // loop_exit
        _
    $region25: #{textlstm_forward.1} parent=1 // pred_fallthru
      _
    // Predicated region
    $region33: #{textlstm_forward.1} parent=1 // pred_check
      _
    $region34: #{textlstm_forward.1} parent=1 // pred_check_branch
      %75 = sbr.rel target = $region36
    $region35: #{textlstm_forward.1} parent=1 // pred_region
      _
    $region36: #{textlstm_forward.1} parent=1 // pred_fallthru
      _
    // Predicated region
    $region37: #{textlstm_forward.1} parent=1 // pred_check
      _
    $region38: #{textlstm_forward.1} parent=1 // pred_check_branch
      %78 = sbr.rel (0) target = $region40
    $region39: #{textlstm_forward.1} parent=1 // pred_region
      %79 = vsyncadd %s47, 1024
    $region40: #{textlstm_forward.1} parent=1 // pred_fallthru
      _
    %v80 = vlaneseq
    %v81 = vand.u32 %v80, 127
    %v82 = vld [vmem:[%s0] sm:$0xff]
    %v83 = vld [vmem:[%s0 + $0x8] sm:$0xff]
    %v84 = vld [vmem:[%s0 + $0x10] sm:$0xff]
    %v85 = vld [vmem:[%s0 + $0x18] sm:$0xff]
    %v86 = vld [vmem:[%s0 + $0x20] sm:$0xff]
    %v87 = vld [vmem:[%s0 + $0x28] sm:$0xff]
    %88 = vset.pattern.permute.xlu0 0
    %89 = vperm.xlu0 %88, %v82
    %v90 = vpop.permute.xlu0 %89
    %91 = vset.pattern.permute.xlu0 0
    %92 = vperm.xlu0 %91, %v83
    %v93 = vpop.permute.xlu0 %92
    %94 = vset.pattern.permute.xlu0 0
    %95 = vperm.xlu0 %94, %v84
    %v96 = vpop.permute.xlu0 %95
    %97 = vset.pattern.permute.xlu0 0
    %98 = vperm.xlu0 %97, %v85
    %v99 = vpop.permute.xlu0 %98
    %100 = vset.pattern.permute.xlu0 0
    %101 = vperm.xlu0 %100, %v86
    %v102 = vpop.permute.xlu0 %101
    %103 = vset.pattern.permute.xlu0 0
    %104 = vperm.xlu0 %103, %v87
    %v105 = vpop.permute.xlu0 %104
    %vm106 = vcmp.eq.s32.totalorder %v90, %v81
    %vm107 = vcmp.eq.s32.totalorder %v93, %v81
    %vm108 = vcmp.eq.s32.totalorder %v96, %v81
    %vm109 = vcmp.eq.s32.totalorder %v99, %v81
    %vm110 = vcmp.eq.s32.totalorder %v102, %v81
    %vm111 = vcmp.eq.s32.totalorder %v105, %v81
    %v112 = vsel %vm106, 1.0, 0.0
    %v113 = vsel %vm107, 1.0, 0.0
    %v114 = vsel %vm108, 1.0, 0.0
    %v115 = vsel %vm109, 1.0, 0.0
    %v116 = vsel %vm110, 1.0, 0.0
    %v117 = vsel %vm111, 1.0, 0.0
    %v118 = vpack.c.bf16 %v113, %v112
    %v119 = vpack.c.bf16 %v115, %v114
    %v120 = vpack.c.bf16 %v117, %v116
    %v121 = vld [vmem:[#allocation5] sm:$0xff]
    %v122 = vld [vmem:[#allocation5 + $0x8] sm:$0xff]
    %v123 = vld [vmem:[#allocation5 + $0x10] sm:$0xff]
    %v124 = vld [vmem:[#allocation5 + $0x18] sm:$0xff]
    %v125 = vld [vmem:[#allocation5 + $0x20] sm:$0xff]
    %v126 = vld [vmem:[#allocation5 + $0x28] sm:$0xff]
    %v127 = vld [vmem:[#allocation5 + $0x30] sm:$0xff]
    %v128 = vld [vmem:[#allocation5 + $0x38] sm:$0xff]
    %v129 = vld [vmem:[#allocation5 + $0x40] sm:$0xff]
    %v130 = vld [vmem:[#allocation5 + $0x48] sm:$0xff]
    %v131 = vld [vmem:[#allocation5 + $0x50] sm:$0xff]
    %v132 = vld [vmem:[#allocation5 + $0x58] sm:$0xff]
    %v133 = vld [vmem:[#allocation5 + $0x60] sm:$0xff]
    %v134 = vld [vmem:[#allocation5 + $0x68] sm:$0xff]
    %v135 = vld [vmem:[#allocation5 + $0x70] sm:$0xff]
    %v136 = vld [vmem:[#allocation5 + $0x78] sm:$0xff]
    %v137 = vld [vmem:[#allocation5 + $0x80] sm:$0xff]
    %v138 = vld [vmem:[#allocation5 + $0x88] sm:$0xff]
    %v139 = vld [vmem:[#allocation5 + $0x90] sm:$0xff]
    %v140 = vld [vmem:[#allocation5 + $0x98] sm:$0xff]
    %v141 = vld [vmem:[#allocation5 + $0xa0] sm:$0xff]
    %v142 = vld [vmem:[#allocation5 + $0xa8] sm:$0xff]
    %v143 = vld [vmem:[#allocation5 + $0xb0] sm:$0xff]
    %v144 = vld [vmem:[#allocation5 + $0xb8] sm:$0xff]
    %v145 = vld [vmem:[#allocation5 + $0xc0] sm:$0xff]
    %v146 = vld [vmem:[#allocation5 + $0xc8] sm:$0xff]
    %v147 = vld [vmem:[#allocation5 + $0xd0] sm:$0xff]
    %v148 = vld [vmem:[#allocation5 + $0xd8] sm:$0xff]
    %v149 = vld [vmem:[#allocation5 + $0xe0] sm:$0xff]
    %v150 = vld [vmem:[#allocation5 + $0xe8] sm:$0xff]
    %v151 = vld [vmem:[#allocation5 + $0xf0] sm:$0xff]
    %v152 = vld [vmem:[#allocation5 + $0xf8] sm:$0xff]
    %v185 = vunpack.c.l.b16 %v121
    %v186 = vunpack.c.h.b16 %v121
    %v187 = vunpack.c.l.b16 %v122
    %v188 = vunpack.c.h.b16 %v122
    %v189 = vunpack.c.l.b16 %v123
    %v190 = vunpack.c.h.b16 %v123
    %v191 = vunpack.c.l.b16 %v124
    %v192 = vunpack.c.h.b16 %v124
    %v193 = vunpack.c.l.b16 %v125
    %v194 = vunpack.c.h.b16 %v125
    %v195 = vunpack.c.l.b16 %v126
    %v196 = vunpack.c.h.b16 %v126
    %v197 = vunpack.c.l.b16 %v127
    %v198 = vunpack.c.h.b16 %v127
    %v199 = vunpack.c.l.b16 %v128
    %v200 = vunpack.c.h.b16 %v128
    %v201 = vunpack.c.l.b16 %v129
    %v202 = vunpack.c.h.b16 %v129
    %v203 = vunpack.c.l.b16 %v130
    %v204 = vunpack.c.h.b16 %v130
    %v205 = vunpack.c.l.b16 %v131
    %v206 = vunpack.c.h.b16 %v131
    %v207 = vunpack.c.l.b16 %v132
    %v208 = vunpack.c.h.b16 %v132
    %v209 = vunpack.c.l.b16 %v133
    %v210 = vunpack.c.h.b16 %v133
    %v211 = vunpack.c.l.b16 %v134
    %v212 = vunpack.c.h.b16 %v134
    %v213 = vunpack.c.l.b16 %v135
    %v214 = vunpack.c.h.b16 %v135
    %v215 = vunpack.c.l.b16 %v136
    %v216 = vunpack.c.h.b16 %v136
    %v217 = vunpack.c.l.b16 %v137
    %v218 = vunpack.c.h.b16 %v137
    %v219 = vunpack.c.l.b16 %v138
    %v220 = vunpack.c.h.b16 %v138
    %v221 = vunpack.c.l.b16 %v139
    %v222 = vunpack.c.h.b16 %v139
    %v223 = vunpack.c.l.b16 %v140
    %v224 = vunpack.c.h.b16 %v140
    %v225 = vunpack.c.l.b16 %v141
    %v226 = vunpack.c.h.b16 %v141
    %v227 = vunpack.c.l.b16 %v142
    %v228 = vunpack.c.h.b16 %v142
    %v229 = vunpack.c.l.b16 %v143
    %v230 = vunpack.c.h.b16 %v143
    %v231 = vunpack.c.l.b16 %v144
    %v232 = vunpack.c.h.b16 %v144
    %v233 = vunpack.c.l.b16 %v145
    %v234 = vunpack.c.h.b16 %v145
    %v235 = vunpack.c.l.b16 %v146
    %v236 = vunpack.c.h.b16 %v146
    %v237 = vunpack.c.l.b16 %v147
    %v238 = vunpack.c.h.b16 %v147
    %v239 = vunpack.c.l.b16 %v148
    %v240 = vunpack.c.h.b16 %v148
    %v241 = vunpack.c.l.b16 %v149
    %v242 = vunpack.c.h.b16 %v149
    %v243 = vunpack.c.l.b16 %v150
    %v244 = vunpack.c.h.b16 %v150
    %v245 = vunpack.c.l.b16 %v151
    %v246 = vunpack.c.h.b16 %v151
    %v247 = vunpack.c.l.b16 %v152
    %v248 = vunpack.c.h.b16 %v152
    %v249 = vpack.c.b16 %v189, %v185
    %v250 = vpack.c.b16 %v190, %v186
    %v251 = vpack.c.b16 %v191, %v187
    %v252 = vpack.c.b16 %v192, %v188
    %v253 = vpack.c.b16 %v197, %v193
    %v254 = vpack.c.b16 %v198, %v194
    %v255 = vpack.c.b16 %v199, %v195
    %v256 = vpack.c.b16 %v200, %v196
    %v257 = vpack.c.b16 %v205, %v201
    %v258 = vpack.c.b16 %v206, %v202
    %v259 = vpack.c.b16 %v207, %v203
    %v260 = vpack.c.b16 %v208, %v204
    %v261 = vpack.c.b16 %v213, %v209
    %v262 = vpack.c.b16 %v214, %v210
    %v263 = vpack.c.b16 %v215, %v211
    %v264 = vpack.c.b16 %v216, %v212
    %v265 = vpack.c.b16 %v221, %v217
    %v266 = vpack.c.b16 %v222, %v218
    %v267 = vpack.c.b16 %v223, %v219
    %v268 = vpack.c.b16 %v224, %v220
    %v269 = vpack.c.b16 %v229, %v225
    %v270 = vpack.c.b16 %v230, %v226
    %v271 = vpack.c.b16 %v231, %v227
    %v272 = vpack.c.b16 %v232, %v228
    %v273 = vpack.c.b16 %v237, %v233
    %v274 = vpack.c.b16 %v238, %v234
    %v275 = vpack.c.b16 %v239, %v235
    %v276 = vpack.c.b16 %v240, %v236
    %v277 = vpack.c.b16 %v245, %v241
    %v278 = vpack.c.b16 %v246, %v242
    %v279 = vpack.c.b16 %v247, %v243
    %v280 = vpack.c.b16 %v248, %v244
    %313 = vmatpush.bf16.msra.mxu0 %v277
    %314 = vmatpush.bf16.msra.mxu0 %v273
    %315 = vmatpush.bf16.msra.mxu0 %v269
    %316 = vmatpush.bf16.msra.mxu0 %v265
    %317 = vmatpush.bf16.msra.mxu0 %v261
    %318 = vmatpush.bf16.msra.mxu0 %v257
    %319 = vmatpush.bf16.msra.mxu0 %v253
    %320 = vmatpush.bf16.msra.mxu0 %v249
    %321 = vmatmul.bf16.gmra.mxu0 %v118
    %v322 = vpop.f32.mrf.mxu0
    %v323 = vadd.f32 0.0, %v322
    %v324 = vpop.f32.mrf.mxu0
    %v325 = vadd.f32 0.0, %v324
    %326 = vmatmul.bf16.gmra.mxu0 %v119
    %v327 = vpop.f32.mrf.mxu0
    %v328 = vadd.f32 0.0, %v327
    %v329 = vpop.f32.mrf.mxu0
    %v330 = vadd.f32 0.0, %v329
    %331 = vmatmul.bf16.gmra.mxu0 %v120
    %v332 = vpop.f32.mrf.mxu0
    %v333 = vadd.f32 0.0, %v332
    %v334 = vpop.f32.mrf.mxu0
    %v335 = vadd.f32 0.0, %v334
    %336 = vdwg.mxu0
    %337 = vmatpush.bf16.msra.mxu0 %v278
    %338 = vmatpush.bf16.msra.mxu0 %v274
    %339 = vmatpush.bf16.msra.mxu0 %v270
    %340 = vmatpush.bf16.msra.mxu0 %v266
    %341 = vmatpush.bf16.msra.mxu0 %v262
    %342 = vmatpush.bf16.msra.mxu0 %v258
    %343 = vmatpush.bf16.msra.mxu0 %v254
    %344 = vmatpush.bf16.msra.mxu0 %v250
    %345 = vmatmul.bf16.gmra.mxu0 %v118
    %v346 = vpop.f32.mrf.mxu0
    %v347 = vadd.f32 0.0, %v346
    %v348 = vpop.f32.mrf.mxu0
    %v349 = vadd.f32 0.0, %v348
    %350 = vmatmul.bf16.gmra.mxu0 %v119
    %v351 = vpop.f32.mrf.mxu0
    %v352 = vadd.f32 0.0, %v351
    %v353 = vpop.f32.mrf.mxu0
    %v354 = vadd.f32 0.0, %v353
    %355 = vmatmul.bf16.gmra.mxu0 %v120
    %v356 = vpop.f32.mrf.mxu0
    %v357 = vadd.f32 0.0, %v356
    %v358 = vpop.f32.mrf.mxu0
    %v359 = vadd.f32 0.0, %v358
    %360 = vdwg.mxu0
    %361 = vmatpush.bf16.msra.mxu0 %v279
    %362 = vmatpush.bf16.msra.mxu0 %v275
    %363 = vmatpush.bf16.msra.mxu0 %v271
    %364 = vmatpush.bf16.msra.mxu0 %v267
    %365 = vmatpush.bf16.msra.mxu0 %v263
    %366 = vmatpush.bf16.msra.mxu0 %v259
    %367 = vmatpush.bf16.msra.mxu0 %v255
    %368 = vmatpush.bf16.msra.mxu0 %v251
    %369 = vmatmul.bf16.gmra.mxu0 %v118
    %v370 = vpop.f32.mrf.mxu0
    %v371 = vadd.f32 0.0, %v370
    %v372 = vpop.f32.mrf.mxu0
    %v373 = vadd.f32 0.0, %v372
    %374 = vmatmul.bf16.gmra.mxu0 %v119
    %v375 = vpop.f32.mrf.mxu0
    %v376 = vadd.f32 0.0, %v375
    %v377 = vpop.f32.mrf.mxu0
    %v378 = vadd.f32 0.0, %v377
    %379 = vmatmul.bf16.gmra.mxu0 %v120
    %v380 = vpop.f32.mrf.mxu0
    %v381 = vadd.f32 0.0, %v380
    %v382 = vpop.f32.mrf.mxu0
    %v383 = vadd.f32 0.0, %v382
    %384 = vdwg.mxu0
    %385 = vmatpush.bf16.msra.mxu0 %v280
    %386 = vmatpush.bf16.msra.mxu0 %v276
    %387 = vmatpush.bf16.msra.mxu0 %v272
    %388 = vmatpush.bf16.msra.mxu0 %v268
    %389 = vmatpush.bf16.msra.mxu0 %v264
    %390 = vmatpush.bf16.msra.mxu0 %v260
    %391 = vmatpush.bf16.msra.mxu0 %v256
    %392 = vmatpush.bf16.msra.mxu0 %v252
    %393 = vmatmul.bf16.gmra.mxu0 %v118
    %v394 = vpop.f32.mrf.mxu0
    %v395 = vadd.f32 0.0, %v394
    %v396 = vpop.f32.mrf.mxu0
    %v397 = vadd.f32 0.0, %v396
    %398 = vmatmul.bf16.gmra.mxu0 %v119
    %v399 = vpop.f32.mrf.mxu0
    %v400 = vadd.f32 0.0, %v399
    %v401 = vpop.f32.mrf.mxu0
    %v402 = vadd.f32 0.0, %v401
    %403 = vmatmul.bf16.gmra.mxu0 %v120
    %v404 = vpop.f32.mrf.mxu0
    %v405 = vadd.f32 0.0, %v404
    %v406 = vpop.f32.mrf.mxu0
    %v407 = vadd.f32 0.0, %v406
    %408 = vdwg.mxu0
    %s409 = smul.u32 4, 16
    %s410 = smul.u32 %s409, 4
    %s411 = sshll.u32 %s410, 4
    %412 = dma.done [#allocation4], %s411
    %v413 = vld [vmem:[#allocation2] sm:$0xff]
    %v414 = vld [vmem:[#allocation2 + $0x8] sm:$0xff]
    %v415 = vld [vmem:[#allocation2 + $0x10] sm:$0xff]
    %v416 = vld [vmem:[#allocation2 + $0x18] sm:$0xff]
    %v417 = vld [vmem:[#allocation2 + $0x20] sm:$0xff]
    %v418 = vld [vmem:[#allocation2 + $0x28] sm:$0xff]
    %v419 = vld [vmem:[#allocation2 + $0x30] sm:$0xff]
    %v420 = vld [vmem:[#allocation2 + $0x38] sm:$0xff]
    %v421 = vld [vmem:[#allocation2 + $0x40] sm:$0xff]
    %v422 = vld [vmem:[#allocation2 + $0x48] sm:$0xff]
    %v423 = vld [vmem:[#allocation2 + $0x50] sm:$0xff]
    %v424 = vld [vmem:[#allocation2 + $0x58] sm:$0xff]
    %v425 = vld [vmem:[#allocation2 + $0x60] sm:$0xff]
    %v426 = vld [vmem:[#allocation2 + $0x68] sm:$0xff]
    %v427 = vld [vmem:[#allocation2 + $0x70] sm:$0xff]
    %v428 = vld [vmem:[#allocation2 + $0x78] sm:$0xff]
    %v429 = vld [vmem:[#allocation2 + $0x80] sm:$0xff]
    %v430 = vld [vmem:[#allocation2 + $0x88] sm:$0xff]
    %v431 = vld [vmem:[#allocation2 + $0x90] sm:$0xff]
    %v432 = vld [vmem:[#allocation2 + $0x98] sm:$0xff]
    %v433 = vld [vmem:[#allocation2 + $0xa0] sm:$0xff]
    %v434 = vld [vmem:[#allocation2 + $0xa8] sm:$0xff]
    %v435 = vld [vmem:[#allocation2 + $0xb0] sm:$0xff]
    %v436 = vld [vmem:[#allocation2 + $0xb8] sm:$0xff]
    %v437 = vld [vmem:[#allocation2 + $0xc0] sm:$0xff]
    %v438 = vld [vmem:[#allocation2 + $0xc8] sm:$0xff]
    %v439 = vld [vmem:[#allocation2 + $0xd0] sm:$0xff]
    %v440 = vld [vmem:[#allocation2 + $0xd8] sm:$0xff]
    %v441 = vld [vmem:[#allocation2 + $0xe0] sm:$0xff]
    %v442 = vld [vmem:[#allocation2 + $0xe8] sm:$0xff]
    %v443 = vld [vmem:[#allocation2 + $0xf0] sm:$0xff]
    %v444 = vld [vmem:[#allocation2 + $0xf8] sm:$0xff]
    %v477 = vunpack.c.l.b16 %v413
    %v478 = vunpack.c.h.b16 %v413
    %v479 = vunpack.c.l.b16 %v414
    %v480 = vunpack.c.h.b16 %v414
    %v481 = vunpack.c.l.b16 %v415
    %v482 = vunpack.c.h.b16 %v415
    %v483 = vunpack.c.l.b16 %v416
    %v484 = vunpack.c.h.b16 %v416
    %v485 = vunpack.c.l.b16 %v417
    %v486 = vunpack.c.h.b16 %v417
    %v487 = vunpack.c.l.b16 %v418
    %v488 = vunpack.c.h.b16 %v418
    %v489 = vunpack.c.l.b16 %v419
    %v490 = vunpack.c.h.b16 %v419
    %v491 = vunpack.c.l.b16 %v420
    %v492 = vunpack.c.h.b16 %v420
    %v493 = vunpack.c.l.b16 %v421
    %v494 = vunpack.c.h.b16 %v421
    %v495 = vunpack.c.l.b16 %v422
    %v496 = vunpack.c.h.b16 %v422
    %v497 = vunpack.c.l.b16 %v423
    %v498 = vunpack.c.h.b16 %v423
    %v499 = vunpack.c.l.b16 %v424
    %v500 = vunpack.c.h.b16 %v424
    %v501 = vunpack.c.l.b16 %v425
    %v502 = vunpack.c.h.b16 %v425
    %v503 = vunpack.c.l.b16 %v426
    %v504 = vunpack.c.h.b16 %v426
    %v505 = vunpack.c.l.b16 %v427
    %v506 = vunpack.c.h.b16 %v427
    %v507 = vunpack.c.l.b16 %v428
    %v508 = vunpack.c.h.b16 %v428
    %v509 = vunpack.c.l.b16 %v429
    %v510 = vunpack.c.h.b16 %v429
    %v511 = vunpack.c.l.b16 %v430
    %v512 = vunpack.c.h.b16 %v430
    %v513 = vunpack.c.l.b16 %v431
    %v514 = vunpack.c.h.b16 %v431
    %v515 = vunpack.c.l.b16 %v432
    %v516 = vunpack.c.h.b16 %v432
    %v517 = vunpack.c.l.b16 %v433
    %v518 = vunpack.c.h.b16 %v433
    %v519 = vunpack.c.l.b16 %v434
    %v520 = vunpack.c.h.b16 %v434
    %v521 = vunpack.c.l.b16 %v435
    %v522 = vunpack.c.h.b16 %v435
    %v523 = vunpack.c.l.b16 %v436
    %v524 = vunpack.c.h.b16 %v436
    %v525 = vunpack.c.l.b16 %v437
    %v526 = vunpack.c.h.b16 %v437
    %v527 = vunpack.c.l.b16 %v438
    %v528 = vunpack.c.h.b16 %v438
    %v529 = vunpack.c.l.b16 %v439
    %v530 = vunpack.c.h.b16 %v439
    %v531 = vunpack.c.l.b16 %v440
    %v532 = vunpack.c.h.b16 %v440
    %v533 = vunpack.c.l.b16 %v441
    %v534 = vunpack.c.h.b16 %v441
    %v535 = vunpack.c.l.b16 %v442
    %v536 = vunpack.c.h.b16 %v442
    %v537 = vunpack.c.l.b16 %v443
    %v538 = vunpack.c.h.b16 %v443
    %v539 = vunpack.c.l.b16 %v444
    %v540 = vunpack.c.h.b16 %v444
    %v541 = vpack.c.b16 %v481, %v477
    %v542 = vpack.c.b16 %v482, %v478
    %v543 = vpack.c.b16 %v483, %v479
    %v544 = vpack.c.b16 %v484, %v480
    %v545 = vpack.c.b16 %v489, %v485
    %v546 = vpack.c.b16 %v490, %v486
    %v547 = vpack.c.b16 %v491, %v487
    %v548 = vpack.c.b16 %v492, %v488
    %v549 = vpack.c.b16 %v497, %v493
    %v550 = vpack.c.b16 %v498, %v494
    %v551 = vpack.c.b16 %v499, %v495
    %v552 = vpack.c.b16 %v500, %v496
    %v553 = vpack.c.b16 %v505, %v501
    %v554 = vpack.c.b16 %v506, %v502
    %v555 = vpack.c.b16 %v507, %v503
    %v556 = vpack.c.b16 %v508, %v504
    %v557 = vpack.c.b16 %v513, %v509
    %v558 = vpack.c.b16 %v514, %v510
    %v559 = vpack.c.b16 %v515, %v511
    %v560 = vpack.c.b16 %v516, %v512
    %v561 = vpack.c.b16 %v521, %v517
    %v562 = vpack.c.b16 %v522, %v518
    %v563 = vpack.c.b16 %v523, %v519
    %v564 = vpack.c.b16 %v524, %v520
    %v565 = vpack.c.b16 %v529, %v525
    %v566 = vpack.c.b16 %v530, %v526
    %v567 = vpack.c.b16 %v531, %v527
    %v568 = vpack.c.b16 %v532, %v528
    %v569 = vpack.c.b16 %v537, %v533
    %v570 = vpack.c.b16 %v538, %v534
    %v571 = vpack.c.b16 %v539, %v535
    %v572 = vpack.c.b16 %v540, %v536
    %605 = vmatpush.bf16.msra.mxu0 %v569
    %606 = vmatpush.bf16.msra.mxu0 %v565
    %607 = vmatpush.bf16.msra.mxu0 %v561
    %608 = vmatpush.bf16.msra.mxu0 %v557
    %609 = vmatpush.bf16.msra.mxu0 %v553
    %610 = vmatpush.bf16.msra.mxu0 %v549
    %611 = vmatpush.bf16.msra.mxu0 %v545
    %612 = vmatpush.bf16.msra.mxu0 %v541
    %613 = vmatmul.bf16.gmra.mxu0 0
    %v614 = vpop.f32.mrf.mxu0
    %v615 = vadd.f32 0.0, %v614
    %v616 = vpop.f32.mrf.mxu0
    %v617 = vadd.f32 0.0, %v616
    %618 = vdwg.mxu0
    %619 = vmatpush.bf16.msra.mxu0 %v570
    %620 = vmatpush.bf16.msra.mxu0 %v566
    %621 = vmatpush.bf16.msra.mxu0 %v562
    %622 = vmatpush.bf16.msra.mxu0 %v558
    %623 = vmatpush.bf16.msra.mxu0 %v554
    %624 = vmatpush.bf16.msra.mxu0 %v550
    %625 = vmatpush.bf16.msra.mxu0 %v546
    %626 = vmatpush.bf16.msra.mxu0 %v542
    %627 = vmatmul.bf16.gmra.mxu0 0
    %v628 = vpop.f32.mrf.mxu0
    %v629 = vadd.f32 0.0, %v628
    %v630 = vpop.f32.mrf.mxu0
    %v631 = vadd.f32 0.0, %v630
    %632 = vdwg.mxu0
    %633 = vmatpush.bf16.msra.mxu0 %v571
    %634 = vmatpush.bf16.msra.mxu0 %v567
    %635 = vmatpush.bf16.msra.mxu0 %v563
    %636 = vmatpush.bf16.msra.mxu0 %v559
    %637 = vmatpush.bf16.msra.mxu0 %v555
    %638 = vmatpush.bf16.msra.mxu0 %v551
    %639 = vmatpush.bf16.msra.mxu0 %v547
    %640 = vmatpush.bf16.msra.mxu0 %v543
    %641 = vmatmul.bf16.gmra.mxu0 0
    %v642 = vpop.f32.mrf.mxu0
    %v643 = vadd.f32 0.0, %v642
    %v644 = vpop.f32.mrf.mxu0
    %v645 = vadd.f32 0.0, %v644
    %646 = vdwg.mxu0
    %647 = vmatpush.bf16.msra.mxu0 %v572
    %648 = vmatpush.bf16.msra.mxu0 %v568
    %649 = vmatpush.bf16.msra.mxu0 %v564
    %650 = vmatpush.bf16.msra.mxu0 %v560
    %651 = vmatpush.bf16.msra.mxu0 %v556
    %652 = vmatpush.bf16.msra.mxu0 %v552
    %653 = vmatpush.bf16.msra.mxu0 %v548
    %654 = vmatpush.bf16.msra.mxu0 %v544
    %655 = vmatmul.bf16.gmra.mxu0 0
    %v656 = vpop.f32.mrf.mxu0
    %v657 = vadd.f32 0.0, %v656
    %v658 = vpop.f32.mrf.mxu0
    %v659 = vadd.f32 0.0, %v658
    %660 = vdwg.mxu0
    %v661 = vadd.f32 %v323, %v615
    %v662 = vadd.f32 %v347, %v629
    %v663 = vadd.f32 %v371, %v643
    %v664 = vadd.f32 %v395, %v657
    %v665 = vadd.f32 %v325, %v617
    %v666 = vadd.f32 %v349, %v631
    %v667 = vadd.f32 %v373, %v645
    %v668 = vadd.f32 %v397, %v659
    %v669 = vxor.u32 %v661, 2147483648
    %v670 = vxor.u32 %v665, 2147483648
    %v671 = vmul.f32 %v669, 1.442695
    %v672 = vpow.pop %v671
    %v673 = vmul.f32 %v670, 1.442695
    %v674 = vpow.pop %v673
    %v675 = vadd.f32 %v672, 1.0
    %v676 = vadd.f32 %v674, 1.0
    %v677 = vrcp.pop %v675
    %v678 = vmul.f32 %v675, %v677
    %v679 = vsub.f32 1.0, %v678
    %v680 = vmul.f32 %v677, %v679
    %v681 = vadd.f32 %v677, %v680
    %vm682 = vweird.f32 %v675
    %vm683 = vweird.f32 %v677
    %vm684 = vmor %vm682, %vm683
    %v685 = vsel %vm684, %v677, %v681
    %v686 = vand.u32 2147483647, %v675
    %vm687 = vcmp.eq.f32.partialorder %v686, 8.507059e+37
    %v688 = vand.u32 %v675, 2147483648
    %v689 = vor.u32 1.1754944e-38, %v688
    %v690 = vsel %vm687, %v689, %v685
    %v691 = vmul.f32 1.0, %v690
    %v692 = vrcp.pop %v676
    %v693 = vmul.f32 %v676, %v692
    %v694 = vsub.f32 1.0, %v693
    %v695 = vmul.f32 %v692, %v694
    %v696 = vadd.f32 %v692, %v695
    %vm697 = vweird.f32 %v676
    %vm698 = vweird.f32 %v692
    %vm699 = vmor %vm697, %vm698
    %v700 = vsel %vm699, %v692, %v696
    %v701 = vand.u32 2147483647, %v676
    %vm702 = vcmp.eq.f32.partialorder %v701, 8.507059e+37
    %v703 = vand.u32 %v676, 2147483648
    %v704 = vor.u32 1.1754944e-38, %v703
    %v705 = vsel %vm702, %v704, %v700
    %v706 = vmul.f32 1.0, %v705
    %v707 = vxor.u32 %v662, 2147483648
    %v708 = vxor.u32 %v666, 2147483648
    %v709 = vmul.f32 %v707, 1.442695
    %v710 = vpow.pop %v709
    %v711 = vmul.f32 %v708, 1.442695
    %v712 = vpow.pop %v711
    %v713 = vadd.f32 %v710, 1.0
    %v714 = vadd.f32 %v712, 1.0
    %v715 = vrcp.pop %v713
    %v716 = vmul.f32 %v713, %v715
    %v717 = vsub.f32 1.0, %v716
    %v718 = vmul.f32 %v715, %v717
    %v719 = vadd.f32 %v715, %v718
    %vm720 = vweird.f32 %v713
    %vm721 = vweird.f32 %v715
    %vm722 = vmor %vm720, %vm721
    %v723 = vsel %vm722, %v715, %v719
    %v724 = vand.u32 2147483647, %v713
    %vm725 = vcmp.eq.f32.partialorder %v724, 8.507059e+37
    %v726 = vand.u32 %v713, 2147483648
    %v727 = vor.u32 1.1754944e-38, %v726
    %v728 = vsel %vm725, %v727, %v723
    %v729 = vmul.f32 1.0, %v728
    %v730 = vrcp.pop %v714
    %v731 = vmul.f32 %v714, %v730
    %v732 = vsub.f32 1.0, %v731
    %v733 = vmul.f32 %v730, %v732
    %v734 = vadd.f32 %v730, %v733
    %vm735 = vweird.f32 %v714
    %vm736 = vweird.f32 %v730
    %vm737 = vmor %vm735, %vm736
    %v738 = vsel %vm737, %v730, %v734
    %v739 = vand.u32 2147483647, %v714
    %vm740 = vcmp.eq.f32.partialorder %v739, 8.507059e+37
    %v741 = vand.u32 %v714, 2147483648
    %v742 = vor.u32 1.1754944e-38, %v741
    %v743 = vsel %vm740, %v742, %v738
    %v744 = vmul.f32 1.0, %v743
    %v745 = vtanh.pop %v663
    %v746 = vtanh.pop %v667
    %v747 = vxor.u32 %v664, 2147483648
    %v748 = vxor.u32 %v668, 2147483648
    %v749 = vmul.f32 %v747, 1.442695
    %v750 = vpow.pop %v749
    %v751 = vmul.f32 %v748, 1.442695
    %v752 = vpow.pop %v751
    %v753 = vadd.f32 %v750, 1.0
    %v754 = vadd.f32 %v752, 1.0
    %v755 = vrcp.pop %v753
    %v756 = vmul.f32 %v753, %v755
    %v757 = vsub.f32 1.0, %v756
    %v758 = vmul.f32 %v755, %v757
    %v759 = vadd.f32 %v755, %v758
    %vm760 = vweird.f32 %v753
    %vm761 = vweird.f32 %v755
    %vm762 = vmor %vm760, %vm761
    %v763 = vsel %vm762, %v755, %v759
    %v764 = vand.u32 2147483647, %v753
    %vm765 = vcmp.eq.f32.partialorder %v764, 8.507059e+37
    %v766 = vand.u32 %v753, 2147483648
    %v767 = vor.u32 1.1754944e-38, %v766
    %v768 = vsel %vm765, %v767, %v763
    %v769 = vmul.f32 1.0, %v768
    %v770 = vrcp.pop %v754
    %v771 = vmul.f32 %v754, %v770
    %v772 = vsub.f32 1.0, %v771
    %v773 = vmul.f32 %v770, %v772
    %v774 = vadd.f32 %v770, %v773
    %vm775 = vweird.f32 %v754
    %vm776 = vweird.f32 %v770
    %vm777 = vmor %vm775, %vm776
    %v778 = vsel %vm777, %v770, %v774
    %v779 = vand.u32 2147483647, %v754
    %vm780 = vcmp.eq.f32.partialorder %v779, 8.507059e+37
    %v781 = vand.u32 %v754, 2147483648
    %v782 = vor.u32 1.1754944e-38, %v781
    %v783 = vsel %vm780, %v782, %v778
    %v784 = vmul.f32 1.0, %v783
    %v785 = vmul.f32 %v729, 0.0
    %v786 = vmul.f32 %v744, 0.0
    %v787 = vmul.f32 %v691, %v745
    %v788 = vmul.f32 %v706, %v746
    %v789 = vadd.f32 %v785, %v787
    %v790 = vadd.f32 %v786, %v788
    %v791 = vtanh.pop %v789
    %v792 = vtanh.pop %v790
    %v793 = vmul.f32 %v769, %v791
    %v794 = vmul.f32 %v784, %v792
    %v795 = vpack.c.bf16 %v794, %v793
    %796 = vmatpush.bf16.msra.mxu0 %v569
    %797 = vmatpush.bf16.msra.mxu0 %v565
    %798 = vmatpush.bf16.msra.mxu0 %v561
    %799 = vmatpush.bf16.msra.mxu0 %v557
    %800 = vmatpush.bf16.msra.mxu0 %v553
    %801 = vmatpush.bf16.msra.mxu0 %v549
    %802 = vmatpush.bf16.msra.mxu0 %v545
    %803 = vmatpush.bf16.msra.mxu0 %v541
    %804 = vmatmul.bf16.gmra.mxu0 %v795
    %v805 = vpop.f32.mrf.mxu0
    %v806 = vadd.f32 0.0, %v805
    %v807 = vpop.f32.mrf.mxu0
    %v808 = vadd.f32 0.0, %v807
    %809 = vdwg.mxu0
    %810 = vmatpush.bf16.msra.mxu0 %v570
    %811 = vmatpush.bf16.msra.mxu0 %v566
    %812 = vmatpush.bf16.msra.mxu0 %v562
    %813 = vmatpush.bf16.msra.mxu0 %v558
    %814 = vmatpush.bf16.msra.mxu0 %v554
    %815 = vmatpush.bf16.msra.mxu0 %v550
    %816 = vmatpush.bf16.msra.mxu0 %v546
    %817 = vmatpush.bf16.msra.mxu0 %v542
    %818 = vmatmul.bf16.gmra.mxu0 %v795
    %v819 = vpop.f32.mrf.mxu0
    %v820 = vadd.f32 0.0, %v819
    %v821 = vpop.f32.mrf.mxu0
    %v822 = vadd.f32 0.0, %v821
    %823 = vdwg.mxu0
    %824 = vmatpush.bf16.msra.mxu0 %v571
    %825 = vmatpush.bf16.msra.mxu0 %v567
    %826 = vmatpush.bf16.msra.mxu0 %v563
    %827 = vmatpush.bf16.msra.mxu0 %v559
    %828 = vmatpush.bf16.msra.mxu0 %v555
    %829 = vmatpush.bf16.msra.mxu0 %v551
    %830 = vmatpush.bf16.msra.mxu0 %v547
    %831 = vmatpush.bf16.msra.mxu0 %v543
    %832 = vmatmul.bf16.gmra.mxu0 %v795
    %v833 = vpop.f32.mrf.mxu0
    %v834 = vadd.f32 0.0, %v833
    %v835 = vpop.f32.mrf.mxu0
    %v836 = vadd.f32 0.0, %v835
    %837 = vdwg.mxu0
    %838 = vmatpush.bf16.msra.mxu0 %v572
    %839 = vmatpush.bf16.msra.mxu0 %v568
    %840 = vmatpush.bf16.msra.mxu0 %v564
    %841 = vmatpush.bf16.msra.mxu0 %v560
    %842 = vmatpush.bf16.msra.mxu0 %v556
    %843 = vmatpush.bf16.msra.mxu0 %v552
    %844 = vmatpush.bf16.msra.mxu0 %v548
    %845 = vmatpush.bf16.msra.mxu0 %v544
    %846 = vmatmul.bf16.gmra.mxu0 %v795
    %v847 = vpop.f32.mrf.mxu0
    %v848 = vadd.f32 0.0, %v847
    %v849 = vpop.f32.mrf.mxu0
    %v850 = vadd.f32 0.0, %v849
    %851 = vdwg.mxu0
    %v852 = vadd.f32 %v328, %v806
    %v853 = vadd.f32 %v352, %v820
    %v854 = vadd.f32 %v376, %v834
    %v855 = vadd.f32 %v400, %v848
    %v856 = vadd.f32 %v330, %v808
    %v857 = vadd.f32 %v354, %v822
    %v858 = vadd.f32 %v378, %v836
    %v859 = vadd.f32 %v402, %v850
    %v860 = vxor.u32 %v852, 2147483648
    %v861 = vxor.u32 %v856, 2147483648
    %v862 = vmul.f32 %v860, 1.442695
    %v863 = vpow.pop %v862
    %v864 = vmul.f32 %v861, 1.442695
    %v865 = vpow.pop %v864
    %v866 = vadd.f32 %v863, 1.0
    %v867 = vadd.f32 %v865, 1.0
    %v868 = vrcp.pop %v866
    %v869 = vmul.f32 %v866, %v868
    %v870 = vsub.f32 1.0, %v869
    %v871 = vmul.f32 %v868, %v870
    %v872 = vadd.f32 %v868, %v871
    %vm873 = vweird.f32 %v866
    %vm874 = vweird.f32 %v868
    %vm875 = vmor %vm873, %vm874
    %v876 = vsel %vm875, %v868, %v872
    %v877 = vand.u32 2147483647, %v866
    %vm878 = vcmp.eq.f32.partialorder %v877, 8.507059e+37
    %v879 = vand.u32 %v866, 2147483648
    %v880 = vor.u32 1.1754944e-38, %v879
    %v881 = vsel %vm878, %v880, %v876
    %v882 = vmul.f32 1.0, %v881
    %v883 = vrcp.pop %v867
    %v884 = vmul.f32 %v867, %v883
    %v885 = vsub.f32 1.0, %v884
    %v886 = vmul.f32 %v883, %v885
    %v887 = vadd.f32 %v883, %v886
    %vm888 = vweird.f32 %v867
    %vm889 = vweird.f32 %v883
    %vm890 = vmor %vm888, %vm889
    %v891 = vsel %vm890, %v883, %v887
    %v892 = vand.u32 2147483647, %v867
    %vm893 = vcmp.eq.f32.partialorder %v892, 8.507059e+37
    %v894 = vand.u32 %v867, 2147483648
    %v895 = vor.u32 1.1754944e-38, %v894
    %v896 = vsel %vm893, %v895, %v891
    %v897 = vmul.f32 1.0, %v896
    %v898 = vxor.u32 %v853, 2147483648
    %v899 = vxor.u32 %v857, 2147483648
    %v900 = vmul.f32 %v898, 1.442695
    %v901 = vpow.pop %v900
    %v902 = vmul.f32 %v899, 1.442695
    %v903 = vpow.pop %v902
    %v904 = vadd.f32 %v901, 1.0
    %v905 = vadd.f32 %v903, 1.0
    %v906 = vrcp.pop %v904
    %v907 = vmul.f32 %v904, %v906
    %v908 = vsub.f32 1.0, %v907
    %v909 = vmul.f32 %v906, %v908
    %v910 = vadd.f32 %v906, %v909
    %vm911 = vweird.f32 %v904
    %vm912 = vweird.f32 %v906
    %vm913 = vmor %vm911, %vm912
    %v914 = vsel %vm913, %v906, %v910
    %v915 = vand.u32 2147483647, %v904
    %vm916 = vcmp.eq.f32.partialorder %v915, 8.507059e+37
    %v917 = vand.u32 %v904, 2147483648
    %v918 = vor.u32 1.1754944e-38, %v917
    %v919 = vsel %vm916, %v918, %v914
    %v920 = vmul.f32 1.0, %v919
    %v921 = vrcp.pop %v905
    %v922 = vmul.f32 %v905, %v921
    %v923 = vsub.f32 1.0, %v922
    %v924 = vmul.f32 %v921, %v923
    %v925 = vadd.f32 %v921, %v924
    %vm926 = vweird.f32 %v905
    %vm927 = vweird.f32 %v921
    %vm928 = vmor %vm926, %vm927
    %v929 = vsel %vm928, %v921, %v925
    %v930 = vand.u32 2147483647, %v905
    %vm931 = vcmp.eq.f32.partialorder %v930, 8.507059e+37
    %v932 = vand.u32 %v905, 2147483648
    %v933 = vor.u32 1.1754944e-38, %v932
    %v934 = vsel %vm931, %v933, %v929
    %v935 = vmul.f32 1.0, %v934
    %v936 = vtanh.pop %v854
    %v937 = vtanh.pop %v858
    %v938 = vxor.u32 %v855, 2147483648
    %v939 = vxor.u32 %v859, 2147483648
    %v940 = vmul.f32 %v938, 1.442695
    %v941 = vpow.pop %v940
    %v942 = vmul.f32 %v939, 1.442695
    %v943 = vpow.pop %v942
    %v944 = vadd.f32 %v941, 1.0
    %v945 = vadd.f32 %v943, 1.0
    %v946 = vrcp.pop %v944
    %v947 = vmul.f32 %v944, %v946
    %v948 = vsub.f32 1.0, %v947
    %v949 = vmul.f32 %v946, %v948
    %v950 = vadd.f32 %v946, %v949
    %vm951 = vweird.f32 %v944
    %vm952 = vweird.f32 %v946
    %vm953 = vmor %vm951, %vm952
    %v954 = vsel %vm953, %v946, %v950
    %v955 = vand.u32 2147483647, %v944
    %vm956 = vcmp.eq.f32.partialorder %v955, 8.507059e+37
    %v957 = vand.u32 %v944, 2147483648
    %v958 = vor.u32 1.1754944e-38, %v957
    %v959 = vsel %vm956, %v958, %v954
    %v960 = vmul.f32 1.0, %v959
    %v961 = vrcp.pop %v945
    %v962 = vmul.f32 %v945, %v961
    %v963 = vsub.f32 1.0, %v962
    %v964 = vmul.f32 %v961, %v963
    %v965 = vadd.f32 %v961, %v964
    %vm966 = vweird.f32 %v945
    %vm967 = vweird.f32 %v961
    %vm968 = vmor %vm966, %vm967
    %v969 = vsel %vm968, %v961, %v965
    %v970 = vand.u32 2147483647, %v945
    %vm971 = vcmp.eq.f32.partialorder %v970, 8.507059e+37
    %v972 = vand.u32 %v945, 2147483648
    %v973 = vor.u32 1.1754944e-38, %v972
    %v974 = vsel %vm971, %v973, %v969
    %v975 = vmul.f32 1.0, %v974
    %v976 = vmul.f32 %v920, %v789
    %v977 = vmul.f32 %v935, %v790
    %v978 = vmul.f32 %v882, %v936
    %v979 = vmul.f32 %v897, %v937
    %v980 = vadd.f32 %v976, %v978
    %v981 = vadd.f32 %v977, %v979
    %v982 = vtanh.pop %v980
    %v983 = vtanh.pop %v981
    %v984 = vmul.f32 %v960, %v982
    %v985 = vmul.f32 %v975, %v983
    %v986 = vpack.c.bf16 %v985, %v984
    %987 = vmatpush.bf16.msra.mxu0 %v569
    %988 = vmatpush.bf16.msra.mxu0 %v565
    %989 = vmatpush.bf16.msra.mxu0 %v561
    %990 = vmatpush.bf16.msra.mxu0 %v557
    %991 = vmatpush.bf16.msra.mxu0 %v553
    %992 = vmatpush.bf16.msra.mxu0 %v549
    %993 = vmatpush.bf16.msra.mxu0 %v545
    %994 = vmatpush.bf16.msra.mxu0 %v541
    %995 = vmatmul.bf16.gmra.mxu0 %v986
    %v996 = vpop.f32.mrf.mxu0
    %v997 = vadd.f32 0.0, %v996
    %v998 = vpop.f32.mrf.mxu0
    %v999 = vadd.f32 0.0, %v998
    %1000 = vdwg.mxu0
    %1001 = vmatpush.bf16.msra.mxu0 %v570
    %1002 = vmatpush.bf16.msra.mxu0 %v566
    %1003 = vmatpush.bf16.msra.mxu0 %v562
    %1004 = vmatpush.bf16.msra.mxu0 %v558
    %1005 = vmatpush.bf16.msra.mxu0 %v554
    %1006 = vmatpush.bf16.msra.mxu0 %v550
    %1007 = vmatpush.bf16.msra.mxu0 %v546
    %1008 = vmatpush.bf16.msra.mxu0 %v542
    %1009 = vmatmul.bf16.gmra.mxu0 %v986
    %v1010 = vpop.f32.mrf.mxu0
    %v1011 = vadd.f32 0.0, %v1010
    %v1012 = vpop.f32.mrf.mxu0
    %v1013 = vadd.f32 0.0, %v1012
    %1014 = vdwg.mxu0
    %1015 = vmatpush.bf16.msra.mxu0 %v571
    %1016 = vmatpush.bf16.msra.mxu0 %v567
    %1017 = vmatpush.bf16.msra.mxu0 %v563
    %1018 = vmatpush.bf16.msra.mxu0 %v559
    %1019 = vmatpush.bf16.msra.mxu0 %v555
    %1020 = vmatpush.bf16.msra.mxu0 %v551
    %1021 = vmatpush.bf16.msra.mxu0 %v547
    %1022 = vmatpush.bf16.msra.mxu0 %v543
    %1023 = vmatmul.bf16.gmra.mxu0 %v986
    %v1024 = vpop.f32.mrf.mxu0
    %v1025 = vadd.f32 0.0, %v1024
    %v1026 = vpop.f32.mrf.mxu0
    %v1027 = vadd.f32 0.0, %v1026
    %1028 = vdwg.mxu0
    %1029 = vmatpush.bf16.msra.mxu0 %v572
    %1030 = vmatpush.bf16.msra.mxu0 %v568
    %1031 = vmatpush.bf16.msra.mxu0 %v564
    %1032 = vmatpush.bf16.msra.mxu0 %v560
    %1033 = vmatpush.bf16.msra.mxu0 %v556
    %1034 = vmatpush.bf16.msra.mxu0 %v552
    %1035 = vmatpush.bf16.msra.mxu0 %v548
    %1036 = vmatpush.bf16.msra.mxu0 %v544
    %1037 = vmatmul.bf16.gmra.mxu0 %v986
    %v1038 = vpop.f32.mrf.mxu0
    %v1039 = vadd.f32 0.0, %v1038
    %v1040 = vpop.f32.mrf.mxu0
    %v1041 = vadd.f32 0.0, %v1040
    %1042 = vdwg.mxu0
    %v1043 = vadd.f32 %v333, %v997
    %v1044 = vadd.f32 %v357, %v1011
    %v1045 = vadd.f32 %v381, %v1025
    %v1046 = vadd.f32 %v405, %v1039
    %v1047 = vadd.f32 %v335, %v999
    %v1048 = vadd.f32 %v359, %v1013
    %v1049 = vadd.f32 %v383, %v1027
    %v1050 = vadd.f32 %v407, %v1041
    %v1051 = vxor.u32 %v1043, 2147483648
    %v1052 = vxor.u32 %v1047, 2147483648
    %v1053 = vmul.f32 %v1051, 1.442695
    %v1054 = vpow.pop %v1053
    %v1055 = vmul.f32 %v1052, 1.442695
    %v1056 = vpow.pop %v1055
    %v1057 = vadd.f32 %v1054, 1.0
    %v1058 = vadd.f32 %v1056, 1.0
    %v1059 = vrcp.pop %v1057
    %v1060 = vmul.f32 %v1057, %v1059
    %v1061 = vsub.f32 1.0, %v1060
    %v1062 = vmul.f32 %v1059, %v1061
    %v1063 = vadd.f32 %v1059, %v1062
    %vm1064 = vweird.f32 %v1057
    %vm1065 = vweird.f32 %v1059
    %vm1066 = vmor %vm1064, %vm1065
    %v1067 = vsel %vm1066, %v1059, %v1063
    %v1068 = vand.u32 2147483647, %v1057
    %vm1069 = vcmp.eq.f32.partialorder %v1068, 8.507059e+37
    %v1070 = vand.u32 %v1057, 2147483648
    %v1071 = vor.u32 1.1754944e-38, %v1070
    %v1072 = vsel %vm1069, %v1071, %v1067
    %v1073 = vmul.f32 1.0, %v1072
    %v1074 = vrcp.pop %v1058
    %v1075 = vmul.f32 %v1058, %v1074
    %v1076 = vsub.f32 1.0, %v1075
    %v1077 = vmul.f32 %v1074, %v1076
    %v1078 = vadd.f32 %v1074, %v1077
    %vm1079 = vweird.f32 %v1058
    %vm1080 = vweird.f32 %v1074
    %vm1081 = vmor %vm1079, %vm1080
    %v1082 = vsel %vm1081, %v1074, %v1078
    %v1083 = vand.u32 2147483647, %v1058
    %vm1084 = vcmp.eq.f32.partialorder %v1083, 8.507059e+37
    %v1085 = vand.u32 %v1058, 2147483648
    %v1086 = vor.u32 1.1754944e-38, %v1085
    %v1087 = vsel %vm1084, %v1086, %v1082
    %v1088 = vmul.f32 1.0, %v1087
    %v1089 = vxor.u32 %v1044, 2147483648
    %v1090 = vxor.u32 %v1048, 2147483648
    %v1091 = vmul.f32 %v1089, 1.442695
    %v1092 = vpow.pop %v1091
    %v1093 = vmul.f32 %v1090, 1.442695
    %v1094 = vpow.pop %v1093
    %v1095 = vadd.f32 %v1092, 1.0
    %v1096 = vadd.f32 %v1094, 1.0
    %v1097 = vrcp.pop %v1095
    %v1098 = vmul.f32 %v1095, %v1097
    %v1099 = vsub.f32 1.0, %v1098
    %v1100 = vmul.f32 %v1097, %v1099
    %v1101 = vadd.f32 %v1097, %v1100
    %vm1102 = vweird.f32 %v1095
    %vm1103 = vweird.f32 %v1097
    %vm1104 = vmor %vm1102, %vm1103
    %v1105 = vsel %vm1104, %v1097, %v1101
    %v1106 = vand.u32 2147483647, %v1095
    %vm1107 = vcmp.eq.f32.partialorder %v1106, 8.507059e+37
    %v1108 = vand.u32 %v1095, 2147483648
    %v1109 = vor.u32 1.1754944e-38, %v1108
    %v1110 = vsel %vm1107, %v1109, %v1105
    %v1111 = vmul.f32 1.0, %v1110
    %v1112 = vrcp.pop %v1096
    %v1113 = vmul.f32 %v1096, %v1112
    %v1114 = vsub.f32 1.0, %v1113
    %v1115 = vmul.f32 %v1112, %v1114
    %v1116 = vadd.f32 %v1112, %v1115
    %vm1117 = vweird.f32 %v1096
    %vm1118 = vweird.f32 %v1112
    %vm1119 = vmor %vm1117, %vm1118
    %v1120 = vsel %vm1119, %v1112, %v1116
    %v1121 = vand.u32 2147483647, %v1096
    %vm1122 = vcmp.eq.f32.partialorder %v1121, 8.507059e+37
    %v1123 = vand.u32 %v1096, 2147483648
    %v1124 = vor.u32 1.1754944e-38, %v1123
    %v1125 = vsel %vm1122, %v1124, %v1120
    %v1126 = vmul.f32 1.0, %v1125
    %v1127 = vtanh.pop %v1045
    %v1128 = vtanh.pop %v1049
    %v1129 = vxor.u32 %v1046, 2147483648
    %v1130 = vxor.u32 %v1050, 2147483648
    %v1131 = vmul.f32 %v1129, 1.442695
    %v1132 = vpow.pop %v1131
    %v1133 = vmul.f32 %v1130, 1.442695
    %v1134 = vpow.pop %v1133
    %v1135 = vadd.f32 %v1132, 1.0
    %v1136 = vadd.f32 %v1134, 1.0
    %v1137 = vrcp.pop %v1135
    %v1138 = vmul.f32 %v1135, %v1137
    %v1139 = vsub.f32 1.0, %v1138
    %v1140 = vmul.f32 %v1137, %v1139
    %v1141 = vadd.f32 %v1137, %v1140
    %vm1142 = vweird.f32 %v1135
    %vm1143 = vweird.f32 %v1137
    %vm1144 = vmor %vm1142, %vm1143
    %v1145 = vsel %vm1144, %v1137, %v1141
    %v1146 = vand.u32 2147483647, %v1135
    %vm1147 = vcmp.eq.f32.partialorder %v1146, 8.507059e+37
    %v1148 = vand.u32 %v1135, 2147483648
    %v1149 = vor.u32 1.1754944e-38, %v1148
    %v1150 = vsel %vm1147, %v1149, %v1145
    %v1151 = vmul.f32 1.0, %v1150
    %v1152 = vrcp.pop %v1136
    %v1153 = vmul.f32 %v1136, %v1152
    %v1154 = vsub.f32 1.0, %v1153
    %v1155 = vmul.f32 %v1152, %v1154
    %v1156 = vadd.f32 %v1152, %v1155
    %vm1157 = vweird.f32 %v1136
    %vm1158 = vweird.f32 %v1152
    %vm1159 = vmor %vm1157, %vm1158
    %v1160 = vsel %vm1159, %v1152, %v1156
    %v1161 = vand.u32 2147483647, %v1136
    %vm1162 = vcmp.eq.f32.partialorder %v1161, 8.507059e+37
    %v1163 = vand.u32 %v1136, 2147483648
    %v1164 = vor.u32 1.1754944e-38, %v1163
    %v1165 = vsel %vm1162, %v1164, %v1160
    %v1166 = vmul.f32 1.0, %v1165
    %v1167 = vmul.f32 %v1111, %v980
    %v1168 = vmul.f32 %v1126, %v981
    %v1169 = vmul.f32 %v1073, %v1127
    %v1170 = vmul.f32 %v1088, %v1128
    %v1171 = vadd.f32 %v1167, %v1169
    %v1172 = vadd.f32 %v1168, %v1170
    %v1173 = vtanh.pop %v1171
    %v1174 = vtanh.pop %v1172
    %v1175 = vmul.f32 %v1151, %v1173
    %v1176 = vmul.f32 %v1166, %v1174
    %s1177 = smul.u32 %s409, 1
    %s1178 = sshll.u32 %s1177, 4
    %1179 = dma.done %s47, %s1178
    %v1180 = vpack.c.bf16 %v1176, %v1175
    %v1181 = vld [vmem:[#allocation3] sm:$0xf]
    %v1182 = vld [vmem:[#allocation3 + $0x4] sm:$0xf]
    %v1183 = vld [vmem:[#allocation3 + $0x8] sm:$0xf]
    %v1184 = vld [vmem:[#allocation3 + $0xc] sm:$0xf]
    %v1185 = vld [vmem:[#allocation3 + $0x10] sm:$0xf]
    %v1186 = vld [vmem:[#allocation3 + $0x14] sm:$0xf]
    %v1187 = vld [vmem:[#allocation3 + $0x18] sm:$0xf]
    %v1188 = vld [vmem:[#allocation3 + $0x1c] sm:$0xf]
    %v1189 = vld [vmem:[#allocation3 + $0x20] sm:$0xf]
    %v1190 = vld [vmem:[#allocation3 + $0x24] sm:$0xf]
    %v1191 = vld [vmem:[#allocation3 + $0x28] sm:$0xf]
    %v1192 = vld [vmem:[#allocation3 + $0x2c] sm:$0xf]
    %v1193 = vld [vmem:[#allocation3 + $0x30] sm:$0xf]
    %v1194 = vld [vmem:[#allocation3 + $0x34] sm:$0xf]
    %v1195 = vld [vmem:[#allocation3 + $0x38] sm:$0xf]
    %v1196 = vld [vmem:[#allocation3 + $0x3c] sm:$0xf]
    %v1197 = vld [vmem:[%s2] sm:$0x1]
    %v1199 = vperm.slane %v1197, 0
    %v1217 = vunpack.c.l.b16 %v1181
    %v1218 = vunpack.c.l.b16 %v1182
    %v1219 = vunpack.c.l.b16 %v1183
    %v1220 = vunpack.c.l.b16 %v1184
    %v1221 = vunpack.c.l.b16 %v1185
    %v1222 = vunpack.c.l.b16 %v1186
    %v1223 = vunpack.c.l.b16 %v1187
    %v1224 = vunpack.c.l.b16 %v1188
    %v1225 = vunpack.c.l.b16 %v1189
    %v1226 = vunpack.c.l.b16 %v1190
    %v1227 = vunpack.c.l.b16 %v1191
    %v1228 = vunpack.c.l.b16 %v1192
    %v1229 = vunpack.c.l.b16 %v1193
    %v1230 = vunpack.c.l.b16 %v1194
    %v1231 = vunpack.c.l.b16 %v1195
    %v1232 = vunpack.c.l.b16 %v1196
    %v1233 = vpack.c.b16 %v1218, %v1217
    %v1234 = vpack.c.b16 %v1220, %v1219
    %v1235 = vpack.c.b16 %v1222, %v1221
    %v1236 = vpack.c.b16 %v1224, %v1223
    %v1237 = vpack.c.b16 %v1226, %v1225
    %v1238 = vpack.c.b16 %v1228, %v1227
    %v1239 = vpack.c.b16 %v1230, %v1229
    %v1240 = vpack.c.b16 %v1232, %v1231
    %1249 = vmatpush.bf16.msra.mxu0 %v1240
    %1250 = vmatpush.bf16.msra.mxu0 %v1239
    %1251 = vmatpush.bf16.msra.mxu0 %v1238
    %1252 = vmatpush.bf16.msra.mxu0 %v1237
    %1253 = vmatpush.bf16.msra.mxu0 %v1236
    %1254 = vmatpush.bf16.msra.mxu0 %v1235
    %1255 = vmatpush.bf16.msra.mxu0 %v1234
    %1256 = vmatpush.bf16.msra.mxu0 %v1233
    %1257 = vmatmul.bf16.gmra.mxu0 %v1180
    %v1258 = vpop.f32.mrf.mxu0
    %v1259 = vadd.f32 %v1199, %v1258
    %v1260 = vpop.f32.mrf.mxu0
    %v1261 = vadd.f32 %v1199, %v1260
    %1262 = vdwg.mxu0
    %1263 = vst [vmem:[#allocation8] sm:$0xff] %v1259
    %1264 = vst [vmem:[#allocation8 + $0x8] sm:$0xff] %v1261
    // Predicated region
    $region41: #{textlstm_forward.1} parent=1 // pred_check
      _
    $region42: #{textlstm_forward.1} parent=1 // pred_check_branch
      %1266 = sbr.rel (0) target = $region44
    $region43: #{textlstm_forward.1} parent=1 // pred_region
      %1268 = vsyncadd [#allocation7], 0
      %s1269 = sshll.u32 [#allocation8], 4
      %s1270 = int_to_ptr.vmem [resolvable:$true] %s1269
      %s1271 = sshll.u32 %s5, 4
      %s1272 = int_to_ptr.hbm [resolvable:$true] %s1271
      %1277 = dma.vmem_to_hbm [thread:$0]  %s1270, 256, %s1272, [#allocation7], 128, 128, 8
    $region44: #{textlstm_forward.1} parent=1 // pred_fallthru
      _
    // Predicated region
    $region45: #{textlstm_forward.1} parent=1 // pred_check
      _
    $region46: #{textlstm_forward.1} parent=1 // pred_check_branch
      %1279 = sbr.rel (0) target = $region48
    $region47: #{textlstm_forward.1} parent=1 // pred_region
      %1281 = dma.done [#allocation7], 256
    $region48: #{textlstm_forward.1} parent=1 // pred_fallthru
      _
    %1282 = vsyncpa [#allocation6], 1
    %1283 = vsyncpa [#allocation7], 1
  %1284 = vsyncmov [#allocation4]
  %s1285 = vpop.sfrf %1284
  %p1286 = scmp.eq.s32.totalorder %s1285, 0
  %p1287 = pneg %p1286
  %1289 = shalt.err (%p1287)
  %s1290 = scalar_lea.sflag [#allocation4], 1
  %1291 = vsyncmov %s1290
  %s1292 = vpop.sfrf %1291
  %p1293 = scmp.eq.s32.totalorder %s1292, 0
  %p1294 = pneg %p1293
  %1296 = shalt.err (%p1294)

</llo_original>
